<compile_context>
chip_gen: v5e
topology: v5e:2x2
jax: 0.10.0
libtpu: 0.0.40
codegen_flags: <defaults>
</compile_context>

<pallas_src>
import jax
import jax.numpy as jnp
import numpy as np
from jax import lax
from jax.experimental import pallas as pl
from jax.experimental.pallas import tpu as pltpu

C_IN, C_OUT, KH, KW = 8, 8, 7, 7
H_IN, W_IN = 14, 14
H_OUT, W_OUT = H_IN - KH + 1, W_IN - KW + 1      # 8, 8
M_PER_SAMPLE = H_OUT * W_OUT                     # 64
K_RAW = C_IN * KH * KW                           # 392
K_TOT = 400                                      # 392 + 1 bias row + 7 zero rows (x8 aligned)

SCALE_VALS = np.array(
    [3.57680109, 0.20652153, 0.0, 0.0, 0.13794327, 0.0, 0.08564419, 0.01622201],
    dtype=np.float32,
)


def _conv_where_kernel(w_ref, x_ref, s_ref, o_ref):
    # w_ref: (C_OUT, K_TOT)   x_ref: (K_TOT, M_BLOCK)
    # s_ref: (1, M_BLOCK)     o_ref: (C_OUT, M_BLOCK)
    # Bias is folded into the matmul via the ones-row of x / bias-column of w.
    acc = jnp.dot(w_ref[...], x_ref[...], preferred_element_type=jnp.float32)
    o_ref[...] = jnp.where(acc > 0, acc, acc * s_ref[...]).astype(o_ref.dtype)


def _choose_m_block(m_total):
    # Largest lane-dense block that still leaves >= 2 full blocks of real work
    # (keeps the "parallel" grid axis shardable across v7x's 2 TensorCores).
    for mb in (2048, 1024, 512, 256):
        if m_total >= 2 * mb:
            return mb
    return 128


def _im2col(x):
    # x: (N, C_IN, H_IN, W_IN) -> (K_RAW, N*H_OUT*W_OUT)
    # column index = n*64 + h*8 + w ; row index k = c_in*49 + kh*7 + kw,
    # matching w.reshape(C_OUT, K_RAW).  Single fused XLA op.
    n = x.shape[0]
    patches = lax.conv_general_dilated_patches(
        x, filter_shape=(KH, KW), window_strides=(1, 1), padding="VALID",
        dimension_numbers=("NCHW", "OIHW", "NCHW"),
    )                                             # (N, K_RAW, H_OUT, W_OUT)
    patches = patches.reshape(n, K_RAW, M_PER_SAMPLE)
    return jnp.transpose(patches, (1, 0, 2)).reshape(K_RAW, n * M_PER_SAMPLE)


def model_forward(x, w, b, scale):
    n = x.shape[0]
    m_block = _choose_m_block(n * M_PER_SAMPLE)
    n_per_block = m_block // M_PER_SAMPLE
    n_pad = pl.cdiv(n, n_per_block) * n_per_block
    if n_pad != n:
        x = jnp.pad(x, ((0, n_pad - n), (0, 0), (0, 0), (0, 0)))
    m_total = n_pad * M_PER_SAMPLE
    num_blocks = m_total // m_block

    # Wrapper-side layout plumbing (all XLA, outside the kernel).
    x_col = _im2col(x)                                            # (K_RAW, m_total)
    x_col = jnp.concatenate(
        [x_col,
         jnp.ones((1, m_total), jnp.float32),                     # bias row
         jnp.zeros((K_TOT - K_RAW - 1, m_total), jnp.float32)],   # align K to x8
        axis=0)                                                   # (K_TOT, m_total)
    w_mat = jnp.concatenate(
        [w.reshape(C_OUT, K_RAW),
         b.reshape(C_OUT, 1),                                     # bias column
         jnp.zeros((C_OUT, K_TOT - K_RAW - 1), jnp.float32)],
        axis=1)                                                   # (C_OUT, K_TOT)
    # Scale has period W_OUT=8 along the flattened column axis; one block-sized
    # tile (constant block index) serves every grid step.
    scale_tile = jnp.tile(scale.reshape(1, W_OUT), (1, m_block // W_OUT))  # (1, m_block)

    cost = pl.CostEstimate(
        flops=2 * C_OUT * K_TOT * m_total,
        transcendentals=0,
        bytes_accessed=4 * (x_col.size + w_mat.size + scale_tile.size
                            + C_OUT * m_total),
    )

    out_flat = pl.pallas_call(
        _conv_where_kernel,
        out_shape=jax.ShapeDtypeStruct((C_OUT, m_total), jnp.float32),
        grid=(num_blocks,),
        in_specs=[
            pl.BlockSpec((C_OUT, K_TOT), lambda i: (0, 0)),
            pl.BlockSpec((K_TOT, m_block), lambda i: (0, i)),
            pl.BlockSpec((1, m_block), lambda i: (0, 0)),
        ],
        out_specs=pl.BlockSpec((C_OUT, m_block), lambda i: (0, i)),
        compiler_params=pltpu.CompilerParams(
            dimension_semantics=("parallel",),
        ),
        cost_estimate=cost,
    )(w_mat, x_col, scale_tile)

    out = out_flat.reshape(C_OUT, n_pad, H_OUT, W_OUT).transpose(1, 0, 2, 3)
    return out[:n]


def reference_forward(x, w, b, scale):
    v1 = lax.conv_general_dilated(
        x, w, window_strides=(1, 1), padding="VALID",
        dimension_numbers=("NCHW", "OIHW", "NCHW"),
    ) + b.reshape(1, C_OUT, 1, 1)
    return jnp.where(v1 > 0, v1, v1 * scale.reshape(1, 1, 1, W_OUT))


if __name__ == "__main__":
    key = jax.random.PRNGKey(0)
    kx, kw, kb = jax.random.split(key, 3)

    # Deterministic params (Conv2d(8, 8, 7): weight (8,8,7,7), bias (8,))
    fan_in = C_IN * KH * KW
    bound = 1.0 / np.sqrt(fan_in)
    w = jax.random.uniform(kw, (C_OUT, C_IN, KH, KW), jnp.float32, -bound, bound)
    b = jax.random.uniform(kb, (C_OUT,), jnp.float32, -bound, bound)
    scale = jnp.asarray(SCALE_VALS)

    # Small deterministic input: batch=4, channels=8, spatial=14 -> output 8x8
    x = jax.random.normal(kx, (4, C_IN, H_IN, W_IN), jnp.float32)

    out = model_forward(x, w, b, scale)
    out = jax.block_until_ready(out)

    ref = reference_forward(x, w, b, scale)
    np.testing.assert_allclose(np.asarray(out), np.asarray(ref), rtol=1e-4, atol=1e-4)

    print("KERNEL_OK")
</pallas_src>

<mosaic_0001>
module attributes {stable_mosaic.version = 11 : i64} {
  func.func @_conv_where_kernel(%arg0: i32, %arg1: memref<8x400xf32, #tpu.memory_space<vmem>>, %arg2: memref<400x128xf32, #tpu.memory_space<vmem>>, %arg3: memref<1x128xf32, #tpu.memory_space<vmem>>, %arg4: memref<8x128xf32, #tpu.memory_space<vmem>>) attributes {dimension_semantics = [#tpu.dimension_semantics<parallel>], iteration_bounds = array<i64: 2>, scalar_prefetch = 0 : i64, scratch_operands = 0 : i64, tpu.core_type = #tpu.core_type<tc>, window_params = [{pipeline_mode = #tpu.pipeline_mode<synchronous>, transform_indices = @transform_0, window_bounds = array<i64: 8, 400>}, {transform_indices = @transform_1, window_bounds = array<i64: 400, 128>}, {pipeline_mode = #tpu.pipeline_mode<synchronous>, transform_indices = @transform_2, window_bounds = array<i64: 1, 128>}, {transform_indices = @transform_3, window_bounds = array<i64: 8, 128>}]} {
    %c0 = arith.constant 0 : index
    %c0_0 = arith.constant 0 : index
    %0 = vector.load %arg1[%c0, %c0_0] : memref<8x400xf32, #tpu.memory_space<vmem>>, vector<8x400xf32>
    %c0_1 = arith.constant 0 : index
    %c0_2 = arith.constant 0 : index
    %1 = vector.load %arg2[%c0_1, %c0_2] : memref<400x128xf32, #tpu.memory_space<vmem>>, vector<400x128xf32>
    %cst = arith.constant dense<0.000000e+00> : vector<8x128xf32>
    %2 = tpu.matmul %0, %1, %cst {dimension_numbers = #tpu.dot_dimension_numbers<[1], [0], [0], [1], [0, 0, 1, 1], [], []>} : vector<8x400xf32>, vector<400x128xf32>, vector<8x128xf32> -> vector<8x128xf32>
    %cst_3 = arith.constant 0.000000e+00 : f32
    %3 = vector.broadcast %cst_3 : f32 to vector<8x128xf32>
    %4 = arith.cmpf ogt, %2, %3 : vector<8x128xf32>
    %c0_4 = arith.constant 0 : index
    %c0_5 = arith.constant 0 : index
    %5 = vector.load %arg3[%c0_4, %c0_5] : memref<1x128xf32, #tpu.memory_space<vmem>>, vector<1x128xf32>
    %6 = vector.broadcast %5 : vector<1x128xf32> to vector<8x128xf32>
    %7 = arith.mulf %2, %6 : vector<8x128xf32>
    %8 = arith.select %4, %2, %7 : vector<8x128xi1>, vector<8x128xf32>
    %c0_6 = arith.constant 0 : index
    %c0_7 = arith.constant 0 : index
    %9 = vector.load %arg4[%c0_6, %c0_7] : memref<8x128xf32, #tpu.memory_space<vmem>>, vector<8x128xf32>
    tpu.vector_store %arg4[%c0_6, %c0_7], %8 {strides = array<i32>} : memref<8x128xf32, #tpu.memory_space<vmem>>, vector<8x128xf32>,
    return
  }
  func.func @transform_0(%arg0: i32) -> (i32, i32) {
    %c0_i32 = arith.constant 0 : i32
    %c0_i32_0 = arith.constant 0 : i32
    %c0_i32_1 = arith.constant 0 : i32
    return %c0_i32, %c0_i32_0 : i32, i32
  }
  func.func @transform_1(%arg0: i32) -> (i32, i32) {
    %c0_i32 = arith.constant 0 : i32
    %c0_i32_0 = arith.constant 0 : i32
    return %c0_i32, %arg0 : i32, i32
  }
  func.func @transform_2(%arg0: i32) -> (i32, i32) {
    %c0_i32 = arith.constant 0 : i32
    %c0_i32_0 = arith.constant 0 : i32
    %c0_i32_1 = arith.constant 0 : i32
    return %c0_i32, %c0_i32_0 : i32, i32
  }
  func.func @transform_3(%arg0: i32) -> (i32, i32) {
    %c0_i32 = arith.constant 0 : i32
    %c0_i32_0 = arith.constant 0 : i32
    return %c0_i32, %arg0 : i32, i32
  }
}

</mosaic_0001>

<llo_original>
// kernel: tpu_custom_call.1
$region0: #{tpu_custom_call.1}
  #allocation0 [shape = 'u32[]', space=smem, size = 0x4, offset = 0x4, fixed_abs, tag = 'smem constant byte address 0x4 - core index']
  #allocation1 [shape = 'u32[72,128]{1,0:T(1,128)}', space=vmem, size = 0x9000, scoped, tag = 'internal scratch']
  %s0 = inlined_call_operand.hbm [shape: f32[8,400], index: 0, kind: input, shape index: {}]
  %s1 = inlined_call_operand.hbm [shape: f32[400,256], index: 1, kind: input, shape index: {}]
  %s2 = inlined_call_operand.vmem [shape: f32[1,128], index: 2, kind: input, shape index: {}]
  %s3 = inlined_call_operand.hbm [shape: f32[8,256], index: 3, kind: output, shape index: {}]
  %s4 = sld [smem:[#allocation0]]
  $region53: #{tpu_custom_call.1} parent=0
    _
  %s6 = ssub.s32 1, %s4
  %s7 = scalar_select 0, %s6, %s4
  $region1: #{tpu_custom_call.1} parent=0
    #allocation2 [shape = 'u8[16384]{0}', space=vmem, size = 0x4000, scoped, tag = 'input window, operand 0, single buffered']
    #allocation3 [shape = 's32[2]{0}', space=sflag, size = 0x8, scoped, tag = 'scoped memory for tpu_custom_call.1']
    #allocation4 [shape = 's32[2]{0}', space=sflag, size = 0x8, scoped, tag = 'scoped memory for tpu_custom_call.1']
    #allocation5 [shape = 'u8[409600]{0}', space=vmem, size = 0x64000, scoped, tag = 'input window, operand 1']
    #allocation6 [shape = 's32[2]{0}', space=sflag, size = 0x8, scoped, tag = 'scoped memory for tpu_custom_call.1']
    #allocation7 [shape = 'u8[8192]{0}', space=vmem, size = 0x2000, scoped, tag = 'output window, operand 0']
    %8 = vsyncpa [#allocation3], 0
    %9 = vsyncpa [#allocation6], 0
    %s10 = scalar_lea.sflag [#allocation6], 1
    %11 = vsyncpa %s10, 0
    %12 = vsyncpa [#allocation4], 0
    %s13 = scalar_lea.sflag [#allocation4], 1
    %14 = vsyncpa %s13, 0
    loop: start=0, step=1, limit=4
    $region2: #{tpu_custom_call.1} parent=1 // loop_pre_header
      _
    $region3: #{tpu_custom_call.1} parent=1 // loop_header
      %s16 = sphi 0, %s20
      %p17 = scmp.ge.s32.totalorder %s16, 4
      %s24 = sphi 0, %s24
      %s26 = sphi 0, %s24
      %s27 = sphi 0, %s26
      %s41 = sphi 0, %s27
      %s47 = sphi 0, %s49
      %s50 = sphi 0, %s47
      %s51 = sphi 0, %s50
      %s67 = sphi 0, %s51
      %s71 = sphi 0, %s71
      %s73 = sphi 0, %s71
      %s74 = sphi 0, %s73
      %s88 = sphi 0, %s74
      %s94 = sphi 0, %s96
      %s97 = sphi 0, %s94
      %s98 = sphi 0, %s97
      %s114 = sphi 0, %s98
    $region4: #{tpu_custom_call.1} parent=1 // loop_header_branch
      %19 = sbr.rel (%p17) target = $region8
    $region5: #{tpu_custom_call.1} parent=1 // loop_body
      %s21 = ssub.s32 %s16, 1
      %s22 = ssub.s32 %s16, 2
      %s23 = sadd.s32 %s16, 1
      %s25 = sadd.s32 %s24, 1
      %p28 = scmp.eq.s32.totalorder %s16, 1
      %p29 = scmp.ne.s32.totalorder %s24, %s26
      %p30 = scmp.eq.s32.totalorder %s16, 0
      %p31 = por %p29, %p30
      %p32 = scmp.ne.s32.totalorder %s24, %s26
      %p33 = scmp.eq.s32.totalorder %s21, 1
      %p34 = por %p32, %p33
      %p35 = scmp.ne.s32.totalorder %s26, %s27
      %p36 = scmp.eq.s32.totalorder %s21, 0
      %p37 = por %p35, %p36
      %p38 = scmp.ne.s32.totalorder %s26, %s27
      %p39 = scmp.eq.s32.totalorder %s22, 1
      %p40 = por %p38, %p39
      %p42 = scmp.ne.s32.totalorder %s27, %s41
      %p43 = scmp.eq.s32.totalorder %s22, 0
      %p44 = por %p42, %p43
      %s45 = ssub.s32 %s16, %s23
      %p46 = scmp.eq.s32.totalorder %s45, 0
      %s48 = sadd.s32 %s47, 1
      %s49 = scalar_select %p46, %s47, %s48
      %p52 = pneg %p46
      %p53 = scmp.eq.s32.totalorder %s16, 1
      %p54 = por %p52, %p53
      %p55 = scmp.ne.s32.totalorder %s47, %s50
      %p56 = scmp.eq.s32.totalorder %s16, 0
      %p57 = por %p55, %p56
      %p58 = scmp.ne.s32.totalorder %s47, %s50
      %p59 = scmp.eq.s32.totalorder %s21, 1
      %p60 = por %p58, %p59
      %p61 = scmp.ne.s32.totalorder %s50, %s51
      %p62 = scmp.eq.s32.totalorder %s21, 0
      %p63 = por %p61, %p62
      %p64 = scmp.ne.s32.totalorder %s50, %s51
      %p65 = scmp.eq.s32.totalorder %s22, 1
      %p66 = por %p64, %p65
      %p68 = scmp.ne.s32.totalorder %s51, %s67
      %p69 = scmp.eq.s32.totalorder %s22, 0
      %p70 = por %p68, %p69
      %s72 = sadd.s32 %s71, 1
      %p75 = scmp.eq.s32.totalorder %s16, 1
      %p76 = scmp.ne.s32.totalorder %s71, %s73
      %p77 = scmp.eq.s32.totalorder %s16, 0
      %p78 = por %p76, %p77
      %p79 = scmp.ne.s32.totalorder %s71, %s73
      %p80 = scmp.eq.s32.totalorder %s21, 1
      %p81 = por %p79, %p80
      %p82 = scmp.ne.s32.totalorder %s73, %s74
      %p83 = scmp.eq.s32.totalorder %s21, 0
      %p84 = por %p82, %p83
      %p85 = scmp.ne.s32.totalorder %s73, %s74
      %p86 = scmp.eq.s32.totalorder %s22, 1
      %p87 = por %p85, %p86
      %p89 = scmp.ne.s32.totalorder %s74, %s88
      %p90 = scmp.eq.s32.totalorder %s22, 0
      %p91 = por %p89, %p90
      %s92 = ssub.s32 %s16, %s23
      %p93 = scmp.eq.s32.totalorder %s92, 0
      %s95 = sadd.s32 %s94, 1
      %s96 = scalar_select %p93, %s94, %s95
      %p99 = pneg %p93
      %p100 = scmp.eq.s32.totalorder %s16, 1
      %p101 = por %p99, %p100
      %p102 = scmp.ne.s32.totalorder %s94, %s97
      %p103 = scmp.eq.s32.totalorder %s16, 0
      %p104 = por %p102, %p103
      %p105 = scmp.ne.s32.totalorder %s94, %s97
      %p106 = scmp.eq.s32.totalorder %s21, 1
      %p107 = por %p105, %p106
      %p108 = scmp.ne.s32.totalorder %s97, %s98
      %p109 = scmp.eq.s32.totalorder %s21, 0
      %p110 = por %p108, %p109
      %p111 = scmp.ne.s32.totalorder %s97, %s98
      %p112 = scmp.eq.s32.totalorder %s22, 1
      %p113 = por %p111, %p112
      %p115 = scmp.ne.s32.totalorder %s98, %s114
      %p116 = scmp.eq.s32.totalorder %s22, 0
      %p117 = por %p115, %p116
      %p118 = scmp.le.s32.totalorder 1, %s16
      %p119 = scmp.lt.s32.totalorder %s16, 3
      %p120 = pnand %p118, %p119
      %p121 = pneg %p120
      // Predicated region
      $region9: #{tpu_custom_call.1} parent=5 // pred_check
        _
      $region10: #{tpu_custom_call.1} parent=5 // pred_check_branch
        %123 = sbr.rel (%p120) target = $region12
      $region11: #{tpu_custom_call.1} parent=5 // pred_region
        %s124 = ssub.s32 %s16, 1
        // Predicated region
        $region13: #{tpu_custom_call.1} parent=11 // pred_check
          %p125 = pneg %p37
        $region14: #{tpu_custom_call.1} parent=11 // pred_check_branch
          %127 = sbr.rel (%p125) target = $region16
        $region15: #{tpu_custom_call.1} parent=11 // pred_region
          %129 = vsyncadd [#allocation3], 0
          %s131 = sshll.u32 %s0, 4
          %s132 = int_to_ptr.hbm [resolvable:$true] %s131
          %s133 = sshll.u32 [#allocation2], 4
          %s134 = int_to_ptr.vmem [resolvable:$true] %s133
          %136 = dma.hbm_to_vmem [thread:$0]  %s132, 512, %s134, [#allocation3]
        $region16: #{tpu_custom_call.1} parent=11 // pred_fallthru
          _
        // Predicated region
        $region17: #{tpu_custom_call.1} parent=11 // pred_check
          %p137 = pneg %p84
        $region18: #{tpu_custom_call.1} parent=11 // pred_check_branch
          %139 = sbr.rel (%p137) target = $region20
        $region19: #{tpu_custom_call.1} parent=11 // pred_region
          _
        $region20: #{tpu_custom_call.1} parent=11 // pred_fallthru
          _
      $region12: #{tpu_custom_call.1} parent=5 // pred_fallthru
        _
      %p140 = scmp.lt.s32.totalorder %s16, 2
      // Predicated region
      $region21: #{tpu_custom_call.1} parent=5 // pred_check
        %p141 = pneg %p140
      $region22: #{tpu_custom_call.1} parent=5 // pred_check_branch
        %143 = sbr.rel (%p141) target = $region24
      $region23: #{tpu_custom_call.1} parent=5 // pred_region
        // Predicated region
        $region25: #{tpu_custom_call.1} parent=23 // pred_check
          %p144 = pneg %p57
        $region26: #{tpu_custom_call.1} parent=23 // pred_check_branch
          %146 = sbr.rel (%p144) target = $region28
        $region27: #{tpu_custom_call.1} parent=23 // pred_region
          %s147 = sand.u32 %s47, 1
          %s148 = scalar_lea.sflag [#allocation6], %s147
          %s149 = sand.u32 %s47, 1
          %s150 = smul.addr %s149, 400
          %s151 = scalar_lea.vmem [#allocation5], %s150
          %153 = vsyncadd %s148, 0
          %s154 = smul.addr %s16, 8
          %s155 = scalar_lea.hbm %s1, %s154
          %s156 = sshll.u32 %s155, 4
          %s157 = int_to_ptr.hbm [resolvable:$true] %s156
          %s158 = sshll.u32 %s151, 4
          %s159 = int_to_ptr.vmem [resolvable:$true] %s158
          %164 = dma.hbm_to_vmem [thread:$0]  %s157, 6400, %s159, %s148, 256, 128, 8
        $region28: #{tpu_custom_call.1} parent=23 // pred_fallthru
          _
      $region24: #{tpu_custom_call.1} parent=5 // pred_fallthru
        _
      %p165 = scmp.le.s32.totalorder 1, %s16
      %p166 = scmp.lt.s32.totalorder %s16, 3
      %p167 = pnand %p165, %p166
      %p168 = pneg %p167
      // Predicated region
      $region29: #{tpu_custom_call.1} parent=5 // pred_check
        _
      $region30: #{tpu_custom_call.1} parent=5 // pred_check_branch
        %170 = sbr.rel (%p167) target = $region32
      $region31: #{tpu_custom_call.1} parent=5 // pred_region
        %s171 = ssub.s32 %s16, 1
        // Predicated region
        $region33: #{tpu_custom_call.1} parent=31 // pred_check
          %p172 = pneg %p37
        $region34: #{tpu_custom_call.1} parent=31 // pred_check_branch
          %174 = sbr.rel (%p172) target = $region36
        $region35: #{tpu_custom_call.1} parent=31 // pred_region
          %176 = dma.done [#allocation3], 512
        $region36: #{tpu_custom_call.1} parent=31 // pred_fallthru
          _
        %s177 = sand.u32 %s50, 1
        %s178 = scalar_lea.sflag [#allocation6], %s177
        %s179 = sand.u32 %s50, 1
        %s180 = smul.addr %s179, 400
        %s181 = scalar_lea.vmem [#allocation5], %s180
        // Predicated region
        $region37: #{tpu_custom_call.1} parent=31 // pred_check
          %p182 = pneg %p63
        $region38: #{tpu_custom_call.1} parent=31 // pred_check_branch
          %184 = sbr.rel (%p182) target = $region40
        $region39: #{tpu_custom_call.1} parent=31 // pred_region
          %186 = dma.done %s178, 6400
        $region40: #{tpu_custom_call.1} parent=31 // pred_fallthru
          _
        %p187 = pneg %p37
        %p188 = pneg %p34
        %s189 = sand.u32 %s50, 1
        %s190 = scalar_lea.sflag [#allocation6], %s189
        %s191 = sand.u32 %s50, 1
        %s192 = smul.addr %s191, 400
        %s193 = scalar_lea.vmem [#allocation5], %s192
        %p194 = pneg %p63
        %p195 = pneg %p60
        %p196 = pneg %p84
        %p197 = pneg %p81
        %p198 = pneg %p110
        %p199 = pneg %p107
        %s200 = sand.u32 %s97, 1
        %s201 = scalar_lea.sflag [#allocation4], %s200
        %s202 = sand.u32 %s97, 1
        %s203 = smul.addr %s202, 8
        %s204 = scalar_lea.vmem [#allocation7], %s203
        %v205 = vld [vmem:[#allocation2] sm:$0xff]
        %v206 = vld [vmem:[#allocation2 + $0x8] sm:$0xff]
        %v207 = vld [vmem:[#allocation2 + $0x10] sm:$0xff]
        %v208 = vld [vmem:[#allocation2 + $0x18] sm:$0xff]
        %v209 = vld [vmem:[%s181] sm:$0xff]
        %v210 = vld [vmem:[%s181 + $0x8] sm:$0xff]
        %v211 = vld [vmem:[%s181 + $0x10] sm:$0xff]
        %v212 = vld [vmem:[%s181 + $0x18] sm:$0xff]
        %v213 = vld [vmem:[%s181 + $0x20] sm:$0xff]
        %v214 = vld [vmem:[%s181 + $0x28] sm:$0xff]
        %v215 = vld [vmem:[%s181 + $0x30] sm:$0xff]
        %v216 = vld [vmem:[%s181 + $0x38] sm:$0xff]
        %v217 = vld [vmem:[%s181 + $0x40] sm:$0xff]
        %v218 = vld [vmem:[%s181 + $0x48] sm:$0xff]
        %v219 = vld [vmem:[%s181 + $0x50] sm:$0xff]
        %v220 = vld [vmem:[%s181 + $0x58] sm:$0xff]
        %v221 = vld [vmem:[%s181 + $0x60] sm:$0xff]
        %v222 = vld [vmem:[%s181 + $0x68] sm:$0xff]
        %v223 = vld [vmem:[%s181 + $0x70] sm:$0xff]
        %v224 = vld [vmem:[%s181 + $0x78] sm:$0xff]
        %v225 = vld [vmem:[%s181 + $0x80] sm:$0xff]
        %v226 = vld [vmem:[%s181 + $0x88] sm:$0xff]
        %v227 = vld [vmem:[%s181 + $0x90] sm:$0xff]
        %v228 = vld [vmem:[%s181 + $0x98] sm:$0xff]
        %v229 = vld [vmem:[%s181 + $0xa0] sm:$0xff]
        %v230 = vld [vmem:[%s181 + $0xa8] sm:$0xff]
        %v231 = vld [vmem:[%s181 + $0xb0] sm:$0xff]
        %v232 = vld [vmem:[%s181 + $0xb8] sm:$0xff]
        %v233 = vld [vmem:[%s181 + $0xc0] sm:$0xff]
        %v234 = vld [vmem:[%s181 + $0xc8] sm:$0xff]
        %v235 = vld [vmem:[%s181 + $0xd0] sm:$0xff]
        %v236 = vld [vmem:[%s181 + $0xd8] sm:$0xff]
        %v237 = vld [vmem:[%s181 + $0xe0] sm:$0xff]
        %v238 = vld [vmem:[%s181 + $0xe8] sm:$0xff]
        %v239 = vld [vmem:[%s181 + $0xf0] sm:$0xff]
        %v240 = vld [vmem:[%s181 + $0xf8] sm:$0xff]
        %v241 = vld [vmem:[%s181 + $0x100] sm:$0xff]
        %v242 = vld [vmem:[%s181 + $0x108] sm:$0xff]
        %v243 = vld [vmem:[%s181 + $0x110] sm:$0xff]
        %v244 = vld [vmem:[%s181 + $0x118] sm:$0xff]
        %v245 = vld [vmem:[%s181 + $0x120] sm:$0xff]
        %v246 = vld [vmem:[%s181 + $0x128] sm:$0xff]
        %v247 = vld [vmem:[%s181 + $0x130] sm:$0xff]
        %v248 = vld [vmem:[%s181 + $0x138] sm:$0xff]
        %v249 = vld [vmem:[%s181 + $0x140] sm:$0xff]
        %v250 = vld [vmem:[%s181 + $0x148] sm:$0xff]
        %v251 = vld [vmem:[%s181 + $0x150] sm:$0xff]
        %v252 = vld [vmem:[%s181 + $0x158] sm:$0xff]
        %v253 = vld [vmem:[%s181 + $0x160] sm:$0xff]
        %v254 = vld [vmem:[%s181 + $0x168] sm:$0xff]
        %v255 = vld [vmem:[%s181 + $0x170] sm:$0xff]
        %v256 = vld [vmem:[%s181 + $0x178] sm:$0xff]
        %v257 = vld [vmem:[%s181 + $0x180] sm:$0xff]
        %v258 = vld [vmem:[%s181 + $0x188] sm:$0xff]
        %vm259 = vcmask 130048
        %v261 = vsel %vm259, %v208, 0
        %263 = vmatpush.msra.mxu0 %v224
        %264 = vmatpush.msra.mxu0 %v223
        %265 = vmatpush.msra.mxu0 %v222
        %266 = vmatpush.msra.mxu0 %v221
        %267 = vmatpush.msra.mxu0 %v220
        %268 = vmatpush.msra.mxu0 %v219
        %269 = vmatpush.msra.mxu0 %v218
        %270 = vmatpush.msra.mxu0 %v217
        %271 = vmatpush.msra.mxu0 %v216
        %272 = vmatpush.msra.mxu0 %v215
        %273 = vmatpush.msra.mxu0 %v214
        %274 = vmatpush.msra.mxu0 %v213
        %275 = vmatpush.msra.mxu0 %v212
        %276 = vmatpush.msra.mxu0 %v211
        %277 = vmatpush.msra.mxu0 %v210
        %278 = vmatpush.msra.mxu0 %v209
        %279 = vmatmul.f32.gmra.mxu0 %v205
        %v280 = vpop.f32.mrf.mxu0
        %v281 = vadd.f32 0.0, %v280
        %282 = vdwg.mxu0
        %283 = vmatpush.msra.mxu0 %v240
        %284 = vmatpush.msra.mxu0 %v239
        %285 = vmatpush.msra.mxu0 %v238
        %286 = vmatpush.msra.mxu0 %v237
        %287 = vmatpush.msra.mxu0 %v236
        %288 = vmatpush.msra.mxu0 %v235
        %289 = vmatpush.msra.mxu0 %v234
        %290 = vmatpush.msra.mxu0 %v233
        %291 = vmatpush.msra.mxu0 %v232
        %292 = vmatpush.msra.mxu0 %v231
        %293 = vmatpush.msra.mxu0 %v230
        %294 = vmatpush.msra.mxu0 %v229
        %295 = vmatpush.msra.mxu0 %v228
        %296 = vmatpush.msra.mxu0 %v227
        %297 = vmatpush.msra.mxu0 %v226
        %298 = vmatpush.msra.mxu0 %v225
        %299 = vmatmul.f32.gmra.mxu0 %v206
        %v300 = vpop.f32.mrf.mxu0
        %v301 = vadd.f32 %v281, %v300
        %302 = vdwg.mxu0
        %303 = vmatpush.msra.mxu0 %v256
        %304 = vmatpush.msra.mxu0 %v255
        %305 = vmatpush.msra.mxu0 %v254
        %306 = vmatpush.msra.mxu0 %v253
        %307 = vmatpush.msra.mxu0 %v252
        %308 = vmatpush.msra.mxu0 %v251
        %309 = vmatpush.msra.mxu0 %v250
        %310 = vmatpush.msra.mxu0 %v249
        %311 = vmatpush.msra.mxu0 %v248
        %312 = vmatpush.msra.mxu0 %v247
        %313 = vmatpush.msra.mxu0 %v246
        %314 = vmatpush.msra.mxu0 %v245
        %315 = vmatpush.msra.mxu0 %v244
        %316 = vmatpush.msra.mxu0 %v243
        %317 = vmatpush.msra.mxu0 %v242
        %318 = vmatpush.msra.mxu0 %v241
        %319 = vmatmul.f32.gmra.mxu0 %v207
        %v320 = vpop.f32.mrf.mxu0
        %v321 = vadd.f32 %v301, %v320
        %322 = vdwg.mxu0
        %323 = vmatpush.msra.mxu0 0.0
        %324 = vmatpush.msra.mxu0 0.0
        %325 = vmatpush.msra.mxu0 0.0
        %326 = vmatpush.msra.mxu0 0.0
        %327 = vmatpush.msra.mxu0 0.0
        %328 = vmatpush.msra.mxu0 0.0
        %329 = vmatpush.msra.mxu0 0.0
        %330 = vmatpush.msra.mxu0 0.0
        %331 = vmatpush.msra.mxu0 0.0
        %332 = vmatpush.msra.mxu0 0.0
        %333 = vmatpush.msra.mxu0 0.0
        %334 = vmatpush.msra.mxu0 0.0
        %335 = vmatpush.msra.mxu0 0.0
        %336 = vmatpush.msra.mxu0 0.0
        %337 = vmatpush.msra.mxu0 %v258
        %338 = vmatpush.msra.mxu0 %v257
        %339 = vmatmul.f32.gmra.mxu0 %v261
        %v340 = vpop.f32.mrf.mxu0
        %v341 = vadd.f32 %v321, %v340
        %342 = vdwg.mxu0
        %vm343 = vcmp.gt.f32.partialorder %v341, 0.0
        %v344 = vld [vmem:[%s2] sm:$0x1]
        %v346 = vperm.slane %v344, 0
        %v348 = vmul.f32 %v341, %v346
        %v349 = vsel %vm343, %v341, %v348
        %350 = vst [vmem:[%s204] sm:$0xff] %v349
        %s351 = sand.u32 %s97, 1
        %s352 = scalar_lea.sflag [#allocation4], %s351
        %s353 = sand.u32 %s97, 1
        %s354 = smul.addr %s353, 8
        %s355 = scalar_lea.vmem [#allocation7], %s354
        // Predicated region
        $region41: #{tpu_custom_call.1} parent=31 // pred_check
          %p356 = pneg %p107
        $region42: #{tpu_custom_call.1} parent=31 // pred_check_branch
          %358 = sbr.rel (%p356) target = $region44
        $region43: #{tpu_custom_call.1} parent=31 // pred_region
          %360 = vsyncadd %s352, 0
          %s361 = smul.addr %s21, 8
          %s362 = scalar_lea.hbm %s3, %s361
          %s364 = sshll.u32 %s355, 4
          %s365 = int_to_ptr.vmem [resolvable:$true] %s364
          %s366 = sshll.u32 %s362, 4
          %s367 = int_to_ptr.hbm [resolvable:$true] %s366
          %369 = dma.vmem_to_hbm [thread:$0]  %s365, 128, %s367, %s352
        $region44: #{tpu_custom_call.1} parent=31 // pred_fallthru
          _
      $region32: #{tpu_custom_call.1} parent=5 // pred_fallthru
        _
      %p370 = scmp.le.s32.totalorder 2, %s16
      // Predicated region
      $region45: #{tpu_custom_call.1} parent=5 // pred_check
        %p371 = pneg %p370
      $region46: #{tpu_custom_call.1} parent=5 // pred_check_branch
        %373 = sbr.rel (%p371) target = $region48
      $region47: #{tpu_custom_call.1} parent=5 // pred_region
        %s374 = ssub.s32 %s16, 2
        // Predicated region
        $region49: #{tpu_custom_call.1} parent=47 // pred_check
          %p375 = pneg %p113
        $region50: #{tpu_custom_call.1} parent=47 // pred_check_branch
          %377 = sbr.rel (%p375) target = $region52
        $region51: #{tpu_custom_call.1} parent=47 // pred_region
          %s378 = sand.u32 %s98, 1
          %s379 = scalar_lea.sflag [#allocation4], %s378
          %s380 = sand.u32 %s98, 1
          %s381 = smul.addr %s380, 8
          %s382 = scalar_lea.vmem [#allocation7], %s381
          %384 = dma.done %s379, 128
        $region52: #{tpu_custom_call.1} parent=47 // pred_fallthru
          _
      $region48: #{tpu_custom_call.1} parent=5 // pred_fallthru
        _
    $region6: #{tpu_custom_call.1} parent=1 // loop_footer
      %s20 = sadd.s32 1, %s16
    $region7: #{tpu_custom_call.1} parent=1 // loop_footer_branch
      %15 = sbr.rel target = $region3
    $region8: #{tpu_custom_call.1} parent=1 // loop_exit
      _
    %385 = vsyncpa [#allocation3], 1
    %s386 = scalar_lea.sflag [#allocation3], 1
    %387 = vsyncpa %s386, 1
    %388 = vsyncpa [#allocation6], 1
    %s389 = scalar_lea.sflag [#allocation6], 1
    %390 = vsyncpa %s389, 1
    %391 = vsyncpa [#allocation4], 1
    %s392 = scalar_lea.sflag [#allocation4], 1
    %393 = vsyncpa %s392, 1

</llo_original>
